<compile_context>
chip_gen: v5e
topology: v5e:2x2
jax: 0.10.0
libtpu: 0.0.40
codegen_flags: <defaults>
</compile_context>

<pallas_src>
import functools

import jax
import jax.numpy as jnp
from jax import lax
from jax.experimental import pallas as pl
from jax.experimental.pallas import tpu as pltpu


def _rep_kernel(adj1_ref, adj2_ref, pad_ref,          # scalar prefetch (SMEM, int32)
                hidden_ref, wq_ref, bq_ref,            # VMEM, VMEM, SMEM scalar
                out_ref,                               # VMEM output (Bt, 1, 3H) f32
                *, Bt, L, H):
    t = pl.program_id(0)
    wq = wq_ref[...]                                   # (H, 1), hidden dtype
    bq = bq_ref[0]                                     # f32 scalar from SMEM
    pos = lax.broadcasted_iota(jnp.int32, (L, 1), 0)   # position in ORIGINAL coords

    def body(r, carry):
        b = t * Bt + r
        h = hidden_ref[r]                                              # (L, H), native dtype

        # context attention scores on the MXU, f32 accumulation
        scores = jnp.dot(h, wq, preferred_element_type=jnp.float32) + bq   # (L, 1) f32
        # masked in original coordinates: pos < pad_len  ->  1e-9 (PyTorch quirk kept)
        scores = jnp.where(pos >= pad_ref[b], scores, jnp.float32(1e-9))
        m = jnp.max(scores, axis=0, keepdims=True)
        e = jnp.exp(scores - m)
        p = e * pl.reciprocal(jnp.sum(e, axis=0, keepdims=True), approx=True)  # (L, 1) f32

        # context = p^T @ h on the MXU (contract over L, lane-dense H output)
        ctx = jnp.dot(p.astype(h.dtype).T, h,
                      preferred_element_type=jnp.float32)              # (1, H) f32

        # head/tail: direct dynamic-slice gathers at (pos - seq_len) mod L
        head = hidden_ref[r, pl.ds(adj1_ref[b], 1), :].astype(jnp.float32)   # (1, H)
        tail = hidden_ref[r, pl.ds(adj2_ref[b], 1), :].astype(jnp.float32)   # (1, H)

        row = jnp.concatenate([head, tail, ctx], axis=1)               # (1, 3H)
        out_ref[pl.ds(r, 1)] = row.reshape(1, 1, 3 * H)
        return carry

    lax.fori_loop(0, Bt, body, None, unroll=True)


def xlnet_entity_with_context_encoder(hidden, att_mask, pos1, pos2,
                                      wq_t, bq, w3, b3, *, batch_tile=4):
    """hidden: (B, L, H) XLNet hidden states (f32 or bf16 — streamed as-is),
    att_mask: (B, L) int, pos1/pos2: (B,) or (B,1) int.
    wq_t: (H, 1) (context_query.weight.T), bq: () (context_query.bias),
    w3: (3H, 3H) (linear.weight), b3: (3H,).  Returns (B, 3H) f32."""
    B, L, H = hidden.shape
    H3 = 3 * H

    if hidden.dtype not in (jnp.bfloat16, jnp.float32):
        hidden = hidden.astype(jnp.float32)
    itemsize = jnp.dtype(hidden.dtype).itemsize

    pos1 = jnp.asarray(pos1).reshape(-1).astype(jnp.int32)
    pos2 = jnp.asarray(pos2).reshape(-1).astype(jnp.int32)
    seq_len = jnp.sum(att_mask.astype(jnp.int32), axis=-1)            # (B,)
    adj1 = jnp.mod(pos1 - seq_len, L).astype(jnp.int32)               # rolled -> original idx
    adj2 = jnp.mod(pos2 - seq_len, L).astype(jnp.int32)
    pad_len = (L - seq_len).astype(jnp.int32)                         # masked prefix length

    # --- batch tile selection ---
    Bt = max(1, min(batch_tile, B))
    if B >= 2:
        Bt = min(Bt, -(-B // 2))          # guarantee >=2 grid steps (v7x dual-TC)
    vmem_budget = 32 * 1024 * 1024        # double-buffered hidden tiles, v7x-safe
    while Bt > 1 and 2 * Bt * L * H * itemsize > vmem_budget:
        Bt = max(1, Bt // 2)
    Bp = ((B + Bt - 1) // Bt) * Bt

    if Bp != B:                                                       # pad batch to tile multiple
        hidden = jnp.pad(hidden, ((0, Bp - B), (0, 0), (0, 0)))
        adj1 = jnp.pad(adj1, (0, Bp - B))                             # 0 keeps slices in-bounds
        adj2 = jnp.pad(adj2, (0, Bp - B))
        pad_len = jnp.pad(pad_len, (0, Bp - B), constant_values=L)

    wq_c = jnp.asarray(wq_t).reshape(H, 1).astype(hidden.dtype)       # MXU dtype = stream dtype
    bq_s = jnp.asarray(bq, jnp.float32).reshape(1)                    # SMEM scalar

    # explicit VMEM accounting: double-buffered hidden + output tiles, weights, headroom
    hid_tile = Bt * L * H * itemsize
    out_tile = Bt * H3 * 4
    vmem_limit = int(2 * hid_tile + 2 * out_tile + 2 * H * itemsize + (2 << 20))
    vmem_limit = min(max(vmem_limit, 8 << 20), 64 << 20)

    kernel = functools.partial(_rep_kernel, Bt=Bt, L=L, H=H)

    rep3 = pl.pallas_call(
        kernel,
        out_shape=jax.ShapeDtypeStruct((Bp, 1, H3), jnp.float32),
        grid_spec=pltpu.PrefetchScalarGridSpec(
            num_scalar_prefetch=3,
            grid=(Bp // Bt,),
            in_specs=[
                pl.BlockSpec((Bt, L, H), lambda t, a1, a2, pd: (t, 0, 0)),   # hidden tile
                pl.BlockSpec((H, 1),     lambda t, a1, a2, pd: (0, 0)),      # wq
                pl.BlockSpec(memory_space=pltpu.MemorySpace.SMEM),           # bq scalar
            ],
            out_specs=pl.BlockSpec((Bt, 1, H3), lambda t, a1, a2, pd: (t, 0, 0)),
        ),
        compiler_params=pltpu.CompilerParams(
            dimension_semantics=("parallel",),
            vmem_limit_bytes=vmem_limit),
    )(adj1, adj2, pad_len, hidden, wq_c, bq_s)

    rep = rep3[:B, 0, :]                                              # (B, 3H) f32
    # Final (3H, 3H) linear hoisted out of the kernel: one dense XLA GEMM.
    return rep @ jnp.asarray(w3, jnp.float32).T + jnp.asarray(b3, jnp.float32)


def _reference(hidden, att_mask, pos1, pos2, wq_t, bq, w3, b3):
    """Pure-JAX reference mirroring the PyTorch forward."""
    B, L, H = hidden.shape
    hidden = hidden.astype(jnp.float32)
    seq_len = att_mask.sum(-1)
    rolled = jnp.stack([jnp.roll(hidden[i], int(seq_len[i]), axis=0) for i in range(B)])
    head = rolled[jnp.arange(B), pos1]
    tail = rolled[jnp.arange(B), pos2]
    scores = (rolled @ wq_t)[..., 0] + bq                       # (B, L)
    idx = jnp.arange(L)[None, :]
    scores = jnp.where(idx < seq_len[:, None], scores, jnp.float32(1e-9))
    attn = jax.nn.softmax(scores, axis=-1)
    context = jnp.einsum('bl,blh->bh', attn, rolled)
    rep = jnp.concatenate([head, tail, context], axis=1)        # (B, 3H)
    return rep @ w3.T + b3


if __name__ == "__main__":
    B, L, H = 2, 8, 32
    H3 = 3 * H

    key = jax.random.PRNGKey(0)
    k_h, k_wq, k_bq, k_w3, k_b3 = jax.random.split(key, 5)

    # synthetic "XLNet hidden states" (kept f32 here so the check vs. the f32
    # reference stays tight; a bf16 backbone output is streamed as-is).
    hidden = jax.random.normal(k_h, (B, L, H), dtype=jnp.float32)

    # left-padded attention mask (content at the end, like the tokenizer produces)
    att_mask = jnp.array([[0, 0, 0, 1, 1, 1, 1, 1],
                          [1, 1, 1, 1, 1, 1, 1, 1]], dtype=jnp.int32)
    pos1 = jnp.array([1, 2], dtype=jnp.int32)
    pos2 = jnp.array([3, 5], dtype=jnp.int32)

    # deterministic parameter init (shapes from __init__: Linear(H,1), Linear(3H,3H))
    wq_t = jax.random.normal(k_wq, (H, 1), dtype=jnp.float32) * 0.1   # context_query.weight.T
    bq = jax.random.normal(k_bq, (), dtype=jnp.float32) * 0.1         # context_query.bias
    w3 = jax.random.normal(k_w3, (H3, H3), dtype=jnp.float32) * 0.05  # linear.weight
    b3 = jax.random.normal(k_b3, (H3,), dtype=jnp.float32) * 0.05     # linear.bias

    out = xlnet_entity_with_context_encoder(hidden, att_mask, pos1, pos2,
                                            wq_t, bq, w3, b3)
    out = jax.block_until_ready(out)

    ref = _reference(hidden, att_mask, pos1, pos2, wq_t, bq, w3, b3)
    assert out.shape == (B, H3)
    # tolerance accounts for the approximate EUP reciprocal in the softmax denominator
    assert jnp.allclose(out, ref, atol=2e-3, rtol=2e-3), \
        f"max abs err {jnp.max(jnp.abs(out - ref))}"

    print("KERNEL_OK")
</pallas_src>

<mosaic_0001>
module attributes {stable_mosaic.version = 11 : i64} {
  func.func @_rep_kernel(%arg0: i32, %arg1: memref<2xi32, #tpu.memory_space<smem>>, %arg2: memref<2xi32, #tpu.memory_space<smem>>, %arg3: memref<2xi32, #tpu.memory_space<smem>>, %arg4: memref<1x8x32xf32, #tpu.memory_space<vmem>>, %arg5: memref<32x1xf32, #tpu.memory_space<vmem>>, %arg6: memref<1xf32, #tpu.memory_space<smem>>, %arg7: memref<1x1x96xf32, #tpu.memory_space<vmem>>) attributes {dimension_semantics = [#tpu.dimension_semantics<parallel>], iteration_bounds = array<i64: 2>, scalar_prefetch = 3 : i64, scratch_operands = 0 : i64, tpu.core_type = #tpu.core_type<tc>, window_params = [{transform_indices = @transform_0, window_bounds = array<i64: 1, 8, 32>}, {pipeline_mode = #tpu.pipeline_mode<synchronous>, transform_indices = @transform_1, window_bounds = array<i64: 32, 1>}, {transform_indices = @transform_2, window_bounds = array<i64: 1>}, {transform_indices = @transform_3, window_bounds = array<i64: 1, 1, 96>}]} {
    %c0 = arith.constant 0 : index
    %c0_0 = arith.constant 0 : index
    %0 = vector.load %arg5[%c0, %c0_0] : memref<32x1xf32, #tpu.memory_space<vmem>>, vector<32x1xf32>
    %c0_1 = arith.constant 0 : index
    %1 = memref.load %arg6[%c0_1] : memref<1xf32, #tpu.memory_space<smem>>
    %2 = tpu.iota {dimensions = array<i32: 0>} : vector<8x1xi32>
    %c0_i32 = arith.constant 0 : i32
    %c1_i32 = arith.constant 1 : i32
    %3 = arith.muli %arg0, %c1_i32 : i32
    %4 = arith.addi %3, %c0_i32 : i32
    %5 = arith.index_cast %c0_i32 : i32 to index
    %c0_2 = arith.constant 0 : index
    %c0_3 = arith.constant 0 : index
    %6 = vector.load %arg4[%5, %c0_2, %c0_3] : memref<1x8x32xf32, #tpu.memory_space<vmem>>, vector<1x8x32xf32>
    %7 = vector.shape_cast %6 : vector<1x8x32xf32> to vector<8x32xf32>
    %cst = arith.constant dense<0.000000e+00> : vector<8x1xf32>
    %8 = tpu.matmul %7, %0, %cst {dimension_numbers = #tpu.dot_dimension_numbers<[1], [0], [0], [1], [0, 0, 1, 1], [], []>} : vector<8x32xf32>, vector<32x1xf32>, vector<8x1xf32> -> vector<8x1xf32>
    %9 = vector.broadcast %1 : f32 to vector<8x1xf32>
    %10 = arith.addf %8, %9 : vector<8x1xf32>
    %11 = arith.index_cast %4 : i32 to index
    %12 = memref.load %arg3[%11] : memref<2xi32, #tpu.memory_space<smem>>
    %13 = vector.broadcast %12 : i32 to vector<8x1xi32>
    %14 = arith.cmpi sge, %2, %13 : vector<8x1xi32>
    %cst_4 = arith.constant 9.99999971E-10 : f32
    %15 = vector.broadcast %cst_4 : f32 to vector<8x1xf32>
    %16 = arith.select %14, %10, %15 : vector<8x1xi1>, vector<8x1xf32>
    %cst_5 = arith.constant dense<0xFF800000> : vector<1xf32>
    %17 = vector.multi_reduction <maximumf>, %16, %cst_5 [0] : vector<8x1xf32> to vector<1xf32>
    %18 = vector.shape_cast %17 : vector<1xf32> to vector<1x1xf32>
    %19 = vector.broadcast %18 : vector<1x1xf32> to vector<8x1xf32>
    %20 = arith.subf %16, %19 : vector<8x1xf32>
    %21 = math.exp %20 : vector<8x1xf32>
    %cst_6 = arith.constant dense<0.000000e+00> : vector<1xf32>
    %22 = vector.multi_reduction <add>, %21, %cst_6 [0] : vector<8x1xf32> to vector<1xf32>
    %23 = vector.shape_cast %22 : vector<1xf32> to vector<1x1xf32>
    %24 = tpu.reciprocal %23 {approx = true} : vector<1x1xf32> -> vector<1x1xf32>
    %25 = vector.broadcast %24 : vector<1x1xf32> to vector<8x1xf32>
    %26 = arith.mulf %21, %25 : vector<8x1xf32>
    %27 = tpu.transpose %26, [1, 0] : vector<8x1xf32> -> vector<1x8xf32>
    %cst_7 = arith.constant dense<0.000000e+00> : vector<1x32xf32>
    %28 = tpu.matmul %27, %7, %cst_7 {dimension_numbers = #tpu.dot_dimension_numbers<[1], [0], [0], [1], [0, 0, 1, 1], [], []>} : vector<1x8xf32>, vector<8x32xf32>, vector<1x32xf32> -> vector<1x32xf32>
    %29 = arith.index_cast %4 : i32 to index
    %30 = memref.load %arg1[%29] : memref<2xi32, #tpu.memory_space<smem>>
    %31 = arith.index_cast %c0_i32 : i32 to index
    %32 = arith.index_cast %30 : i32 to index
    %c0_8 = arith.constant 0 : index
    %33 = vector.load %arg4[%31, %32, %c0_8] : memref<1x8x32xf32, #tpu.memory_space<vmem>>, vector<1x1x32xf32>
    %34 = vector.shape_cast %33 : vector<1x1x32xf32> to vector<1x32xf32>
    %35 = arith.index_cast %4 : i32 to index
    %36 = memref.load %arg2[%35] : memref<2xi32, #tpu.memory_space<smem>>
    %37 = arith.index_cast %c0_i32 : i32 to index
    %38 = arith.index_cast %36 : i32 to index
    %c0_9 = arith.constant 0 : index
    %39 = vector.load %arg4[%37, %38, %c0_9] : memref<1x8x32xf32, #tpu.memory_space<vmem>>, vector<1x1x32xf32>
    %40 = vector.shape_cast %39 : vector<1x1x32xf32> to vector<1x32xf32>
    %41 = tpu.concatenate %34, %40, %28 in 1 : vector<1x32xf32>, vector<1x32xf32>, vector<1x32xf32> -> vector<1x96xf32>
    %42 = vector.shape_cast %41 : vector<1x96xf32> to vector<1x1x96xf32>
    %43 = arith.index_cast %c0_i32 : i32 to index
    %c0_10 = arith.constant 0 : index
    %c0_11 = arith.constant 0 : index
    %44 = vector.load %arg7[%43, %c0_10, %c0_11] : memref<1x1x96xf32, #tpu.memory_space<vmem>>, vector<1x1x96xf32>
    tpu.vector_store %arg7[%43, %c0_10, %c0_11], %42 {strides = array<i32>} : memref<1x1x96xf32, #tpu.memory_space<vmem>>, vector<1x1x96xf32>,
    %c1_i32_12 = arith.constant 1 : i32
    return
  }
  func.func @transform_0(%arg0: i32, %arg1: memref<2xi32, #tpu.memory_space<smem>>, %arg2: memref<2xi32, #tpu.memory_space<smem>>, %arg3: memref<2xi32, #tpu.memory_space<smem>>) -> (i32, i32, i32) {
    %c0_i32 = arith.constant 0 : i32
    %c0_i32_0 = arith.constant 0 : i32
    %c0_i32_1 = arith.constant 0 : i32
    return %arg0, %c0_i32, %c0_i32_0 : i32, i32, i32
  }
  func.func @transform_1(%arg0: i32, %arg1: memref<2xi32, #tpu.memory_space<smem>>, %arg2: memref<2xi32, #tpu.memory_space<smem>>, %arg3: memref<2xi32, #tpu.memory_space<smem>>) -> (i32, i32) {
    %c0_i32 = arith.constant 0 : i32
    %c0_i32_0 = arith.constant 0 : i32
    %c0_i32_1 = arith.constant 0 : i32
    return %c0_i32, %c0_i32_0 : i32, i32
  }
  func.func @transform_2(%arg0: i32, %arg1: memref<2xi32, #tpu.memory_space<smem>>, %arg2: memref<2xi32, #tpu.memory_space<smem>>, %arg3: memref<2xi32, #tpu.memory_space<smem>>) -> i32 {
    %c0_i32 = arith.constant 0 : i32
    %c0_i32_0 = arith.constant 0 : i32
    return %c0_i32 : i32
  }
  func.func @transform_3(%arg0: i32, %arg1: memref<2xi32, #tpu.memory_space<smem>>, %arg2: memref<2xi32, #tpu.memory_space<smem>>, %arg3: memref<2xi32, #tpu.memory_space<smem>>) -> (i32, i32, i32) {
    %c0_i32 = arith.constant 0 : i32
    %c0_i32_0 = arith.constant 0 : i32
    %c0_i32_1 = arith.constant 0 : i32
    return %arg0, %c0_i32, %c0_i32_0 : i32, i32, i32
  }
}

</mosaic_0001>

<llo_original>
// kernel: tpu_custom_call.1
$region0: #{tpu_custom_call.1}
  #allocation0 [shape = 'u32[]', space=smem, size = 0x4, offset = 0x4, fixed_abs, tag = 'smem constant byte address 0x4 - core index']
  #allocation1 [shape = 'u32[72,128]{1,0:T(1,128)}', space=vmem, size = 0x9000, scoped, tag = 'internal scratch']
  #allocation2 [shape = 's32[1]{0}', space=sflag, size = 0x4, scoped, tag = 'scoped memory for tpu_custom_call.1']
  #allocation3 [shape = 'u8[512]{0}', space=smem, size = 0x200, scoped, tag = 'prefetched SMEM operand 0']
  #allocation4 [shape = 'u8[512]{0}', space=smem, size = 0x200, scoped, tag = 'prefetched SMEM operand 1']
  #allocation5 [shape = 'u8[512]{0}', space=smem, size = 0x200, scoped, tag = 'prefetched SMEM operand 2']
  #allocation6 [shape = 'f32[1]{0:T(128)S(6)}', space=smem, size = 0x200, scoped, tag = 'scoped memory for tpu_custom_call.1']
  %s0 = inlined_call_operand.vmem [shape: s32[2], index: 0, kind: input, shape index: {}]
  %s1 = inlined_call_operand.vmem [shape: s32[2], index: 1, kind: input, shape index: {}]
  %s2 = inlined_call_operand.vmem [shape: s32[2], index: 2, kind: input, shape index: {}]
  %s3 = inlined_call_operand.vmem [shape: f32[2,8,32], index: 3, kind: input, shape index: {}]
  %s4 = inlined_call_operand.vmem [shape: f32[32,1], index: 4, kind: input, shape index: {}]
  %s5 = inlined_call_operand.<no memory space> [shape: f32[1], index: 5, kind: input, shape index: {}]
  %s6 = inlined_call_operand.hbm [shape: f32[2,1,96], index: 6, kind: output, shape index: {}]
  %s7 = sld [smem:[#allocation0]]
  $region45: #{tpu_custom_call.1} parent=0
    _
  %s9 = ssub.s32 1, %s7
  %s10 = scalar_select 0, %s9, %s7
  %s12 = sshll.u32 %s0, 4
  %s13 = int_to_ptr.vmem [resolvable:$true] %s12
  %15 = dma.vmem_to_smem %s13, 16, [#allocation3], [#allocation2]
  %s17 = sshll.u32 %s1, 4
  %s18 = int_to_ptr.vmem [resolvable:$true] %s17
  %20 = dma.vmem_to_smem %s18, 16, [#allocation4], [#allocation2]
  %s22 = sshll.u32 %s2, 4
  %s23 = int_to_ptr.vmem [resolvable:$true] %s22
  %25 = dma.vmem_to_smem %s23, 16, [#allocation5], [#allocation2]
  %26 = sst [smem:[#allocation6]] %s5
  %28 = dma.done [#allocation2], 48
  %29 = sfence
  $region1: #{tpu_custom_call.1} parent=0
    #allocation7 [shape = 'u8[1024]{0}', space=vmem, size = 0x400, scoped, tag = 'output window, operand 0']
    #allocation8 [shape = 's32[2]{0}', space=sflag, size = 0x8, scoped, tag = 'scoped memory for tpu_custom_call.1']
    %30 = vsyncpa [#allocation8], 0
    %s31 = scalar_lea.sflag [#allocation8], 1
    %32 = vsyncpa %s31, 0
    loop: start=0, step=1, limit=4
    $region2: #{tpu_custom_call.1} parent=1 // loop_pre_header
      _
    $region3: #{tpu_custom_call.1} parent=1 // loop_header
      %s34 = sphi 0, %s38
      %p35 = scmp.ge.s32.totalorder %s34, 4
      %s44 = sphi 0, %s46
      %s47 = sphi 0, %s44
      %s48 = sphi 0, %s47
      %s64 = sphi 0, %s48
      %s68 = sphi 0, %s68
      %s70 = sphi 0, %s68
      %s71 = sphi 0, %s70
      %s85 = sphi 0, %s71
      %s89 = sphi 0, %s89
      %s91 = sphi 0, %s89
      %s92 = sphi 0, %s91
      %s106 = sphi 0, %s92
      %s112 = sphi 0, %s114
      %s115 = sphi 0, %s112
      %s116 = sphi 0, %s115
      %s132 = sphi 0, %s116
    $region4: #{tpu_custom_call.1} parent=1 // loop_header_branch
      %37 = sbr.rel (%p35) target = $region8
    $region5: #{tpu_custom_call.1} parent=1 // loop_body
      %s39 = ssub.s32 %s34, 1
      %s40 = ssub.s32 %s34, 2
      %s41 = sadd.s32 %s34, 1
      %s42 = ssub.s32 %s34, %s41
      %p43 = scmp.eq.s32.totalorder %s42, 0
      %s45 = sadd.s32 %s44, 1
      %s46 = scalar_select %p43, %s44, %s45
      %p49 = pneg %p43
      %p50 = scmp.eq.s32.totalorder %s34, 1
      %p51 = por %p49, %p50
      %p52 = scmp.ne.s32.totalorder %s44, %s47
      %p53 = scmp.eq.s32.totalorder %s34, 0
      %p54 = por %p52, %p53
      %p55 = scmp.ne.s32.totalorder %s44, %s47
      %p56 = scmp.eq.s32.totalorder %s39, 1
      %p57 = por %p55, %p56
      %p58 = scmp.ne.s32.totalorder %s47, %s48
      %p59 = scmp.eq.s32.totalorder %s39, 0
      %p60 = por %p58, %p59
      %p61 = scmp.ne.s32.totalorder %s47, %s48
      %p62 = scmp.eq.s32.totalorder %s40, 1
      %p63 = por %p61, %p62
      %p65 = scmp.ne.s32.totalorder %s48, %s64
      %p66 = scmp.eq.s32.totalorder %s40, 0
      %p67 = por %p65, %p66
      %s69 = sadd.s32 %s68, 1
      %p72 = scmp.eq.s32.totalorder %s34, 1
      %p73 = scmp.ne.s32.totalorder %s68, %s70
      %p74 = scmp.eq.s32.totalorder %s34, 0
      %p75 = por %p73, %p74
      %p76 = scmp.ne.s32.totalorder %s68, %s70
      %p77 = scmp.eq.s32.totalorder %s39, 1
      %p78 = por %p76, %p77
      %p79 = scmp.ne.s32.totalorder %s70, %s71
      %p80 = scmp.eq.s32.totalorder %s39, 0
      %p81 = por %p79, %p80
      %p82 = scmp.ne.s32.totalorder %s70, %s71
      %p83 = scmp.eq.s32.totalorder %s40, 1
      %p84 = por %p82, %p83
      %p86 = scmp.ne.s32.totalorder %s71, %s85
      %p87 = scmp.eq.s32.totalorder %s40, 0
      %p88 = por %p86, %p87
      %s90 = sadd.s32 %s89, 1
      %p93 = scmp.eq.s32.totalorder %s34, 1
      %p94 = scmp.ne.s32.totalorder %s89, %s91
      %p95 = scmp.eq.s32.totalorder %s34, 0
      %p96 = por %p94, %p95
      %p97 = scmp.ne.s32.totalorder %s89, %s91
      %p98 = scmp.eq.s32.totalorder %s39, 1
      %p99 = por %p97, %p98
      %p100 = scmp.ne.s32.totalorder %s91, %s92
      %p101 = scmp.eq.s32.totalorder %s39, 0
      %p102 = por %p100, %p101
      %p103 = scmp.ne.s32.totalorder %s91, %s92
      %p104 = scmp.eq.s32.totalorder %s40, 1
      %p105 = por %p103, %p104
      %p107 = scmp.ne.s32.totalorder %s92, %s106
      %p108 = scmp.eq.s32.totalorder %s40, 0
      %p109 = por %p107, %p108
      %s110 = ssub.s32 %s34, %s41
      %p111 = scmp.eq.s32.totalorder %s110, 0
      %s113 = sadd.s32 %s112, 1
      %s114 = scalar_select %p111, %s112, %s113
      %p117 = pneg %p111
      %p118 = scmp.eq.s32.totalorder %s34, 1
      %p119 = por %p117, %p118
      %p120 = scmp.ne.s32.totalorder %s112, %s115
      %p121 = scmp.eq.s32.totalorder %s34, 0
      %p122 = por %p120, %p121
      %p123 = scmp.ne.s32.totalorder %s112, %s115
      %p124 = scmp.eq.s32.totalorder %s39, 1
      %p125 = por %p123, %p124
      %p126 = scmp.ne.s32.totalorder %s115, %s116
      %p127 = scmp.eq.s32.totalorder %s39, 0
      %p128 = por %p126, %p127
      %p129 = scmp.ne.s32.totalorder %s115, %s116
      %p130 = scmp.eq.s32.totalorder %s40, 1
      %p131 = por %p129, %p130
      %p133 = scmp.ne.s32.totalorder %s116, %s132
      %p134 = scmp.eq.s32.totalorder %s40, 0
      %p135 = por %p133, %p134
      %p136 = scmp.le.s32.totalorder 1, %s34
      %p137 = scmp.lt.s32.totalorder %s34, 3
      %p138 = pnand %p136, %p137
      %p139 = pneg %p138
      // Predicated region
      $region9: #{tpu_custom_call.1} parent=5 // pred_check
        _
      $region10: #{tpu_custom_call.1} parent=5 // pred_check_branch
        %141 = sbr.rel (%p138) target = $region12
      $region11: #{tpu_custom_call.1} parent=5 // pred_region
        %s142 = ssub.s32 %s34, 1
        // Predicated region
        $region13: #{tpu_custom_call.1} parent=11 // pred_check
          %p143 = pneg %p81
        $region14: #{tpu_custom_call.1} parent=11 // pred_check_branch
          %145 = sbr.rel (%p143) target = $region16
        $region15: #{tpu_custom_call.1} parent=11 // pred_region
          _
        $region16: #{tpu_custom_call.1} parent=11 // pred_fallthru
          _
        // Predicated region
        $region17: #{tpu_custom_call.1} parent=11 // pred_check
          %p146 = pneg %p102
        $region18: #{tpu_custom_call.1} parent=11 // pred_check_branch
          %148 = sbr.rel (%p146) target = $region20
        $region19: #{tpu_custom_call.1} parent=11 // pred_region
          _
        $region20: #{tpu_custom_call.1} parent=11 // pred_fallthru
          _
      $region12: #{tpu_custom_call.1} parent=5 // pred_fallthru
        _
      %p149 = scmp.lt.s32.totalorder %s34, 2
      // Predicated region
      $region21: #{tpu_custom_call.1} parent=5 // pred_check
        %p150 = pneg %p149
      $region22: #{tpu_custom_call.1} parent=5 // pred_check_branch
        %152 = sbr.rel (%p150) target = $region24
      $region23: #{tpu_custom_call.1} parent=5 // pred_region
        // Predicated region
        $region25: #{tpu_custom_call.1} parent=23 // pred_check
          %p153 = pneg %p54
        $region26: #{tpu_custom_call.1} parent=23 // pred_check_branch
          %155 = sbr.rel (%p153) target = $region28
        $region27: #{tpu_custom_call.1} parent=23 // pred_region
          %p156 = scmp.lt.s32.totalorder %s34, 1
          %s157 = scalar_select %p156, %s34, 1
          %s158 = smul.addr %s157, 8
          %s159 = scalar_lea.vmem %s3, %s158
        $region28: #{tpu_custom_call.1} parent=23 // pred_fallthru
          _
      $region24: #{tpu_custom_call.1} parent=5 // pred_fallthru
        _
      %p160 = scmp.le.s32.totalorder 1, %s34
      %p161 = scmp.lt.s32.totalorder %s34, 3
      %p162 = pnand %p160, %p161
      %p163 = pneg %p162
      // Predicated region
      $region29: #{tpu_custom_call.1} parent=5 // pred_check
        _
      $region30: #{tpu_custom_call.1} parent=5 // pred_check_branch
        %165 = sbr.rel (%p162) target = $region32
      $region31: #{tpu_custom_call.1} parent=5 // pred_region
        %s166 = ssub.s32 %s34, 1
        %p167 = scmp.lt.s32.totalorder %s39, 1
        %s168 = scalar_select %p167, %s39, 1
        %s169 = smul.addr %s168, 8
        %s170 = scalar_lea.vmem %s3, %s169
        %p171 = pneg %p60
        %p172 = pneg %p57
        %p173 = pneg %p81
        %p174 = pneg %p78
        %p175 = pneg %p102
        %p176 = pneg %p99
        %p177 = pneg %p128
        %p178 = pneg %p125
        %s179 = sand.u32 %s115, 1
        %s180 = scalar_lea.sflag [#allocation8], %s179
        %s181 = sand.u32 %s115, 1
        %s182 = scalar_lea.vmem [#allocation7], %s181
        %p183 = scmp.lt.s32.totalorder %s39, 1
        %s184 = scalar_select %p183, %s39, 1
        %s185 = smul.addr %s184, 8
        %s186 = scalar_lea.vmem %s3, %s185
        %v187 = vld [vmem:[%s4] sm:$0xff]
        %v188 = vld [vmem:[%s4 + $0x8] sm:$0xff]
        %v189 = vld [vmem:[%s4 + $0x10] sm:$0xff]
        %v190 = vld [vmem:[%s4 + $0x18] sm:$0xff]
        %s191 = sld [smem:[#allocation6]]
        %v192 = vlaneseq
        %v193 = vshrl.u32 %v192, 7
        %v194 = vld [vmem:[%s186] sm:$0xff]
        %v195 = vstv %s191
        %vm196 = vcmask 261120
        %v198 = vsel %vm196, %v194, 0
        %200 = vmatpush.msra.mxu0 0.0
        %201 = vmatpush.msra.mxu0 0.0
        %202 = vmatpush.msra.mxu0 0.0
        %203 = vmatpush.msra.mxu0 0.0
        %204 = vmatpush.msra.mxu0 0.0
        %205 = vmatpush.msra.mxu0 0.0
        %206 = vmatpush.msra.mxu0 0.0
        %207 = vmatpush.msra.mxu0 0.0
        %208 = vmatpush.msra.mxu0 0.0
        %209 = vmatpush.msra.mxu0 0.0
        %210 = vmatpush.msra.mxu0 0.0
        %211 = vmatpush.msra.mxu0 0.0
        %212 = vmatpush.msra.mxu0 %v190
        %213 = vmatpush.msra.mxu0 %v189
        %214 = vmatpush.msra.mxu0 %v188
        %215 = vmatpush.msra.mxu0 %v187
        %216 = vmatmul.f32.gmra.mxu0 %v198
        %v217 = vpop.f32.mrf.mxu0
        %v218 = vadd.f32 %v195, %v217
        %219 = vdwg.mxu0
        %s220 = sld [smem:[#allocation5 + %s39]]
        %v221 = vstv %s220
        %vm222 = vcmp.ge.s32.totalorder %v193, %v221
        %v223 = vsel %vm222, %v218, 1e-09
        %vm224 = vcmask 7168
        %v225 = vsel %vm224, %v223, -inf
        %v226 = vrot.slane %v225, 4
        %v227 = vmax.f32 %v225, %v226
        %v228 = vrot.slane %v227, 2
        %v229 = vmax.f32 %v227, %v228
        %v230 = vrot.slane %v229, 1
        %v231 = vmax.f32 %v229, %v230
        %v232 = vsub.f32 %v223, %v231
        %v233 = vmul.f32 %v232, 1.442695
        %v234 = vpow.pop %v233
        %v235 = vsel %vm224, %v234, 0.0
        %v236 = vrot.slane %v235, 4
        %v237 = vadd.f32 %v235, %v236
        %v238 = vrot.slane %v237, 2
        %v239 = vadd.f32 %v237, %v238
        %v240 = vrot.slane %v239, 1
        %v241 = vadd.f32 %v239, %v240
        %v242 = vrcp.pop %v241
        %v243 = vmul.f32 %v234, %v242
        %244 = vxpose.xlu0.b32.start [1/16] %v243, 128
        %245 = vxpose.xlu0.b32.cont [2/16] 0.0, 128
        %246 = vxpose.xlu0.b32.cont [3/16] 0.0, 128
        %247 = vxpose.xlu0.b32.cont [4/16] 0.0, 128
        %248 = vxpose.xlu0.b32.cont [5/16] 0.0, 128
        %249 = vxpose.xlu0.b32.cont [6/16] 0.0, 128
        %250 = vxpose.xlu0.b32.cont [7/16] 0.0, 128
        %251 = vxpose.xlu0.b32.cont [8/16] 0.0, 128
        %252 = vxpose.xlu0.b32.cont [9/16] 0.0, 128
        %253 = vxpose.xlu0.b32.cont [10/16] 0.0, 128
        %254 = vxpose.xlu0.b32.cont [11/16] 0.0, 128
        %255 = vxpose.xlu0.b32.cont [12/16] 0.0, 128
        %256 = vxpose.xlu0.b32.cont [13/16] 0.0, 128
        %257 = vxpose.xlu0.b32.cont [14/16] 0.0, 128
        %258 = vxpose.xlu0.b32.cont [15/16] 0.0, 128
        %259 = vxpose.xlu0.b32.end [16/16] 0.0, 128
        %v260 = vpop.trf.xlu0
        %v261 = vpop.trf.xlu0
        %v262 = vpop.trf.xlu0
        %v263 = vpop.trf.xlu0
        %v264 = vpop.trf.xlu0
        %v265 = vpop.trf.xlu0
        %v266 = vpop.trf.xlu0
        %v267 = vpop.trf.xlu0
        %v268 = vpop.trf.xlu0
        %v269 = vpop.trf.xlu0
        %v270 = vpop.trf.xlu0
        %v271 = vpop.trf.xlu0
        %v272 = vpop.trf.xlu0
        %v273 = vpop.trf.xlu0
        %v274 = vpop.trf.xlu0
        %v275 = vpop.trf.xlu0
        %vm276 = vcmask 64512
        %v278 = vsel %vm276, %v260, 0
        %280 = vmatpush.msra.mxu0 0.0
        %281 = vmatpush.msra.mxu0 0.0
        %282 = vmatpush.msra.mxu0 0.0
        %283 = vmatpush.msra.mxu0 0.0
        %284 = vmatpush.msra.mxu0 0.0
        %285 = vmatpush.msra.mxu0 0.0
        %286 = vmatpush.msra.mxu0 0.0
        %287 = vmatpush.msra.mxu0 0.0
        %288 = vmatpush.msra.mxu0 0.0
        %289 = vmatpush.msra.mxu0 0.0
        %290 = vmatpush.msra.mxu0 0.0
        %291 = vmatpush.msra.mxu0 0.0
        %292 = vmatpush.msra.mxu0 0.0
        %293 = vmatpush.msra.mxu0 0.0
        %294 = vmatpush.msra.mxu0 0.0
        %295 = vmatpush.msra.mxu0 %v194
        %296 = vmatmul.f32.gmra.mxu0 %v278
        %v297 = vpop.f32.mrf.mxu0
        %v298 = vadd.f32 0.0, %v297
        %299 = vdwg.mxu0
        %s300 = sld [smem:[#allocation3 + %s39]]
        %s301 = scalar_lea.vmem %s186, %s300
        %v302 = vld [vmem:[%s301] sm:$0x1]
        %s303 = sld [smem:[#allocation4 + %s39]]
        %s304 = scalar_lea.vmem %s186, %s303
        %v305 = vld [vmem:[%s304] sm:$0x1]
        %307 = vrot.lane.b32.xlu0 %v305, 32
        %v308 = vpop.permute.xlu0 %307
        %311 = vrot.lane.b32.xlu0 %v298, 64
        %v312 = vpop.permute.xlu0 %311
        %v314 = vsel %vm196, %v302, %v308
        %vm315 = vcmask 523264
        %v316 = vsel %vm315, %v314, %v312
        %vm317 = vcmask 778240
        %318 = vst.msk [vmem:[%s182] sm:$0x1] %vm317, %v316
        %s319 = sand.u32 %s115, 1
        %s320 = scalar_lea.sflag [#allocation8], %s319
        %s321 = sand.u32 %s115, 1
        %s322 = scalar_lea.vmem [#allocation7], %s321
        // Predicated region
        $region33: #{tpu_custom_call.1} parent=31 // pred_check
          %p323 = pneg %p125
        $region34: #{tpu_custom_call.1} parent=31 // pred_check_branch
          %325 = sbr.rel (%p323) target = $region36
        $region35: #{tpu_custom_call.1} parent=31 // pred_region
          %327 = vsyncadd %s320, 0
          %s328 = scalar_lea.hbm %s6, %s39
          %s330 = sshll.u32 %s322, 4
          %s331 = int_to_ptr.vmem [resolvable:$true] %s330
          %s332 = sshll.u32 %s328, 4
          %s333 = int_to_ptr.hbm [resolvable:$true] %s332
          %335 = dma.vmem_to_hbm [thread:$0]  %s331, 16, %s333, %s320
        $region36: #{tpu_custom_call.1} parent=31 // pred_fallthru
          _
      $region32: #{tpu_custom_call.1} parent=5 // pred_fallthru
        _
      %p336 = scmp.le.s32.totalorder 2, %s34
      // Predicated region
      $region37: #{tpu_custom_call.1} parent=5 // pred_check
        %p337 = pneg %p336
      $region38: #{tpu_custom_call.1} parent=5 // pred_check_branch
        %339 = sbr.rel (%p337) target = $region40
      $region39: #{tpu_custom_call.1} parent=5 // pred_region
        %s340 = ssub.s32 %s34, 2
        // Predicated region
        $region41: #{tpu_custom_call.1} parent=39 // pred_check
          %p341 = pneg %p131
        $region42: #{tpu_custom_call.1} parent=39 // pred_check_branch
          %343 = sbr.rel (%p341) target = $region44
        $region43: #{tpu_custom_call.1} parent=39 // pred_region
          %s344 = sand.u32 %s116, 1
          %s345 = scalar_lea.sflag [#allocation8], %s344
          %s346 = sand.u32 %s116, 1
          %s347 = scalar_lea.vmem [#allocation7], %s346
          %349 = dma.done %s345, 16
        $region44: #{tpu_custom_call.1} parent=39 // pred_fallthru
          _
      $region40: #{tpu_custom_call.1} parent=5 // pred_fallthru
        _
    $region6: #{tpu_custom_call.1} parent=1 // loop_footer
      %s38 = sadd.s32 1, %s34
    $region7: #{tpu_custom_call.1} parent=1 // loop_footer_branch
      %33 = sbr.rel target = $region3
    $region8: #{tpu_custom_call.1} parent=1 // loop_exit
      _
    %350 = vsyncpa [#allocation8], 1
    %s351 = scalar_lea.sflag [#allocation8], 1
    %352 = vsyncpa %s351, 1

</llo_original>
